<compile_context>
chip_gen: v5e
topology: v5e:2x2
jax: 0.10.0
libtpu: 0.0.40
codegen_flags: <defaults>
</compile_context>

<pallas_src>
import jax
import jax.numpy as jnp
from jax.experimental import pallas as pl
from jax.experimental.pallas import tpu as pltpu

BN_EPS = 1e-5
LANE = 128
VMEM_LIMIT_BYTES = 32 * 1024 * 1024   # <= physical VMEM on v5e/v6e/v7x
VMEM_STEP_BUDGET = 20 * 1024 * 1024   # per-grid-step buffer budget (headroom left)


def _round_up(x, m):
    return ((x + m - 1) // m) * m


def _linear_bn_kernel(x_ref, w_ref, gb_ref, o_ref, acc_ref):
    k = pl.program_id(1)

    @pl.when(k == 0)
    def _():
        acc_ref[...] = jnp.zeros_like(acc_ref)

    # Linear (bias-free): bias is init'd to 0 AND cancelled by the BN mean
    # subtraction.  bf16 x/w on the MXU, f32 accumulation.
    acc_ref[...] += jnp.dot(x_ref[...], w_ref[...],
                            preferred_element_type=jnp.float32)

    @pl.when(k == pl.num_programs(1) - 1)
    def _():
        y = acc_ref[...]                              # (B, tn) f32

        # BatchNorm1d (training mode), one-pass biased batch stats over B.
        inv_n = 1.0 / y.shape[0]
        s = jnp.sum(y, axis=0, keepdims=True)         # (1, tn)
        ss = jnp.sum(y * y, axis=0, keepdims=True)    # (1, tn)
        mean = s * inv_n
        var = jnp.maximum(ss * inv_n - mean * mean, 0.0)

        gamma = gb_ref[0:1, :]                        # (1, tn)
        beta = gb_ref[1:2, :]                         # (1, tn)

        # Fold gamma into inv_std on the small (1, tn) row, then one
        # multiply-add over the (B, tn) tile.
        scale = jax.lax.rsqrt(var + BN_EPS) * gamma
        shift = beta - mean * scale
        o_ref[...] = (y * scale + shift).astype(o_ref.dtype)


def _step_bytes(B, tn, tk):
    x_b = 2 * B * tk * 2          # bf16 x block, double-buffered
    w_b = 2 * tk * tn * 2         # bf16 weight block, double-buffered
    gb_b = 2 * 2 * tn * 4         # gamma/beta block, double-buffered
    out_b = 2 * B * tn * 4        # f32 output block, double-buffered
    acc_b = B * tn * 4            # f32 accumulator scratch
    return x_b + w_b + gb_b + out_b + acc_b


def _choose_tiles(B, Cin, Cout_p):
    """Pick (tn, tk, Cin_padded) under the VMEM budget.

    Prefers: whole-Cin blocks (no K-tiling) when they fit, >=2 Cout tiles when
    Cout allows it (v7x megacore), and the largest lane-dense tn that fits
    (bytes-per-grid-step >> per-step overhead).
    """
    tn_cands = sorted(
        (t for t in range(LANE, Cout_p + 1, LANE) if Cout_p % t == 0),
        reverse=True)
    want_split = Cout_p >= 2 * LANE   # give the parallel axis >=2 tiles

    # 1) No K-tiling: single (Cin, tn) weight block per step.
    for tn in tn_cands:
        if want_split and Cout_p // tn < 2:
            continue
        if _step_bytes(B, tn, Cin) <= VMEM_STEP_BUDGET:
            return tn, Cin, Cin

    # 2) K-tiling: pad Cin to 128 and pick the largest (tn, tk) that fits.
    cin_p = _round_up(Cin, LANE)
    tk_cands = sorted(
        (t for t in range(LANE, cin_p + 1, LANE) if cin_p % t == 0),
        reverse=True)
    for tn in tn_cands:
        if want_split and Cout_p // tn < 2:
            continue
        for tk in tk_cands:
            if _step_bytes(B, tn, tk) <= VMEM_STEP_BUDGET:
                return tn, tk, cin_p

    # 3) Fallback: smallest lane-dense tiles.
    return LANE, min(LANE, cin_p), cin_p


def linear_batchnorm(x, w, gamma_beta):
    """Fused Linear (bias=0) + training-mode BatchNorm1d.

    x:          (B, Cin)    f32
    w:          (Cin, Cout) f32 (pre-transposed nn.Linear weight)
    gamma_beta: (2, Cout)   f32 -- row 0 = BN weight (gamma), row 1 = BN bias (beta)
    Returns (B, Cout) f32.

    The batch axis is kept whole in every block (required for exact BN stats);
    Cout is tiled across the parallel grid axis, Cin across the reduction axis.
    """
    B, Cin = x.shape
    Cout = w.shape[1]
    assert gamma_beta.shape == (2, Cout)

    # Lane-dense output: pad Cout to a multiple of 128 (padded columns see
    # zero weights -> y = 0, var = 0, rsqrt(eps) finite; sliced off at the end).
    Cout_p = _round_up(Cout, LANE)
    if Cout_p != Cout:
        w = jnp.pad(w, ((0, 0), (0, Cout_p - Cout)))
        gamma_beta = jnp.pad(gamma_beta, ((0, 0), (0, Cout_p - Cout)))

    tn, tk, cin_p = _choose_tiles(B, Cin, Cout_p)

    # Zero-pad the reduction axis when K-tiling forces a 128-multiple Cin
    # (zero x columns contribute nothing to the matmul).
    if cin_p != Cin:
        x = jnp.pad(x, ((0, 0), (0, cin_p - Cin)))
        w = jnp.pad(w, ((0, cin_p - Cin), (0, 0)))

    # bf16 inputs to the MXU (f32 accumulation + f32 BN epilogue in-kernel).
    x = x.astype(jnp.bfloat16)
    w = w.astype(jnp.bfloat16)
    gamma_beta = gamma_beta.astype(jnp.float32)

    grid = (Cout_p // tn, cin_p // tk)

    out = pl.pallas_call(
        _linear_bn_kernel,
        out_shape=jax.ShapeDtypeStruct((B, Cout_p), jnp.float32),
        grid_spec=pltpu.PrefetchScalarGridSpec(
            num_scalar_prefetch=0,
            grid=grid,
            in_specs=[
                pl.BlockSpec((B, tk), lambda j, k: (0, k)),   # x K-slab
                pl.BlockSpec((tk, tn), lambda j, k: (k, j)),  # weight tile
                pl.BlockSpec((2, tn), lambda j, k: (0, j)),   # packed gamma/beta
            ],
            out_specs=pl.BlockSpec((B, tn), lambda j, k: (0, j)),
            scratch_shapes=[pltpu.VMEM((B, tn), jnp.float32)],
        ),
        compiler_params=pltpu.CompilerParams(
            # Cout tiles are independent (megacore sharding on v7x); the K
            # axis is a reduction -> "arbitrary", and kept last.
            dimension_semantics=("parallel", "arbitrary"),
            vmem_limit_bytes=VMEM_LIMIT_BYTES,
        ),
    )(x, w, gamma_beta)

    if Cout_p != Cout:
        out = out[:, :Cout]
    return out


if __name__ == "__main__":
    # Small shapes: batch=8, in_features=32, out_features=256 (2 Cout tiles).
    B, Cin, Cout = 8, 32, 256

    key = jax.random.PRNGKey(0)
    kx, kw, kg = jax.random.split(key, 3)

    x = jax.random.normal(kx, (B, Cin), dtype=jnp.float32)

    # Deterministic init matching Model._init_weights:
    #   Linear: weight ~ N(0, 0.02), bias = 0 (dropped: cancelled by BN mean)
    #   BatchNorm1d: weight ~ N(1, 0.02), bias = 0
    w = 0.02 * jax.random.normal(kw, (Cin, Cout), dtype=jnp.float32)
    gamma = 1.0 + 0.02 * jax.random.normal(kg, (1, Cout), dtype=jnp.float32)
    beta = jnp.zeros((1, Cout), dtype=jnp.float32)
    gamma_beta = jnp.concatenate([gamma, beta], axis=0)  # (2, Cout)

    out = linear_batchnorm(x, w, gamma_beta)
    jax.block_until_ready(out)

    # Cross-check against a plain-JAX reference of the same forward
    # (bf16 matmul with f32 accumulation, matching the kernel's MXU path;
    # bias = 0 per _init_weights and cancelled by BN anyway).
    y_ref = jnp.dot(x.astype(jnp.bfloat16), w.astype(jnp.bfloat16),
                    preferred_element_type=jnp.float32)
    mean = y_ref.mean(axis=0, keepdims=True)
    var = ((y_ref - mean) ** 2).mean(axis=0, keepdims=True)
    ref = (y_ref - mean) / jnp.sqrt(var + BN_EPS) * gamma + beta

    assert out.shape == (B, Cout)
    assert jnp.allclose(out, ref, atol=1e-2, rtol=1e-2), "mismatch vs reference"

    print("KERNEL_OK")
</pallas_src>

<mosaic_0001>
module attributes {stable_mosaic.version = 11 : i64} {
  func.func @_linear_bn_kernel(%arg0: i32, %arg1: i32, %arg2: memref<8x32xbf16, #tpu.memory_space<vmem>>, %arg3: memref<32x128xbf16, #tpu.memory_space<vmem>>, %arg4: memref<2x128xf32, #tpu.memory_space<vmem>>, %arg5: memref<8x128xf32, #tpu.memory_space<vmem>>, %arg6: memref<8x128xf32, #tpu.memory_space<vmem>>) attributes {dimension_semantics = [#tpu.dimension_semantics<parallel>, #tpu.dimension_semantics<arbitrary>], iteration_bounds = array<i64: 2, 1>, scalar_prefetch = 0 : i64, scratch_operands = 1 : i64, tpu.core_type = #tpu.core_type<tc>, window_params = [{transform_indices = @transform_0, window_bounds = array<i64: 8, 32>}, {transform_indices = @transform_1, window_bounds = array<i64: 32, 128>}, {transform_indices = @transform_2, window_bounds = array<i64: 2, 128>}, {transform_indices = @transform_3, window_bounds = array<i64: 8, 128>}]} {
    %c0_i32 = arith.constant 0 : i32
    %0 = arith.cmpi eq, %arg1, %c0_i32 : i32
    %1 = arith.extui %0 : i1 to i32
    %c0_i32_0 = arith.constant 0 : i32
    %2 = arith.cmpi ne, %1, %c0_i32_0 : i32
    scf.if %2 {
      %cst_10 = arith.constant 0.000000e+00 : f32
      %12 = vector.broadcast %cst_10 : f32 to vector<8x128xf32>
      %c0_11 = arith.constant 0 : index
      %c0_12 = arith.constant 0 : index
      %13 = vector.load %arg6[%c0_11, %c0_12] : memref<8x128xf32, #tpu.memory_space<vmem>>, vector<8x128xf32>
      tpu.vector_store %arg6[%c0_11, %c0_12], %12 {strides = array<i32>} : memref<8x128xf32, #tpu.memory_space<vmem>>, vector<8x128xf32>,
    } else {
    }
    %c0 = arith.constant 0 : index
    %c0_1 = arith.constant 0 : index
    %3 = vector.load %arg6[%c0, %c0_1] : memref<8x128xf32, #tpu.memory_space<vmem>>, vector<8x128xf32>
    %c0_2 = arith.constant 0 : index
    %c0_3 = arith.constant 0 : index
    %4 = vector.load %arg2[%c0_2, %c0_3] : memref<8x32xbf16, #tpu.memory_space<vmem>>, vector<8x32xbf16>
    %c0_4 = arith.constant 0 : index
    %c0_5 = arith.constant 0 : index
    %5 = vector.load %arg3[%c0_4, %c0_5] : memref<32x128xbf16, #tpu.memory_space<vmem>>, vector<32x128xbf16>
    %cst = arith.constant dense<0.000000e+00> : vector<8x128xf32>
    %6 = tpu.matmul %4, %5, %cst {dimension_numbers = #tpu.dot_dimension_numbers<[1], [0], [0], [1], [0, 0, 1, 1], [], []>} : vector<8x32xbf16>, vector<32x128xbf16>, vector<8x128xf32> -> vector<8x128xf32>
    %7 = arith.addf %3, %6 : vector<8x128xf32>
    %c0_6 = arith.constant 0 : index
    %c0_7 = arith.constant 0 : index
    %8 = vector.load %arg6[%c0_6, %c0_7] : memref<8x128xf32, #tpu.memory_space<vmem>>, vector<8x128xf32>
    tpu.vector_store %arg6[%c0_6, %c0_7], %7 {strides = array<i32>} : memref<8x128xf32, #tpu.memory_space<vmem>>, vector<8x128xf32>,
    %c0_i32_8 = arith.constant 0 : i32
    %9 = arith.cmpi eq, %arg1, %c0_i32_8 : i32
    %10 = arith.extui %9 : i1 to i32
    %c0_i32_9 = arith.constant 0 : i32
    %11 = arith.cmpi ne, %10, %c0_i32_9 : i32
    scf.if %11 {
      %c0_10 = arith.constant 0 : index
      %c0_11 = arith.constant 0 : index
      %12 = vector.load %arg6[%c0_10, %c0_11] : memref<8x128xf32, #tpu.memory_space<vmem>>, vector<8x128xf32>
      %cst_12 = arith.constant dense<0.000000e+00> : vector<128xf32>
      %13 = vector.multi_reduction <add>, %12, %cst_12 [0] : vector<8x128xf32> to vector<128xf32>
      %14 = vector.shape_cast %13 : vector<128xf32> to vector<1x128xf32>
      %15 = arith.mulf %12, %12 : vector<8x128xf32>
      %cst_13 = arith.constant dense<0.000000e+00> : vector<128xf32>
      %16 = vector.multi_reduction <add>, %15, %cst_13 [0] : vector<8x128xf32> to vector<128xf32>
      %17 = vector.shape_cast %16 : vector<128xf32> to vector<1x128xf32>
      %cst_14 = arith.constant 1.250000e-01 : f32
      %18 = vector.broadcast %cst_14 : f32 to vector<1x128xf32>
      %19 = arith.mulf %14, %18 : vector<1x128xf32>
      %cst_15 = arith.constant 1.250000e-01 : f32
      %20 = vector.broadcast %cst_15 : f32 to vector<1x128xf32>
      %21 = arith.mulf %17, %20 : vector<1x128xf32>
      %22 = arith.mulf %19, %19 : vector<1x128xf32>
      %23 = arith.subf %21, %22 : vector<1x128xf32>
      %cst_16 = arith.constant 0.000000e+00 : f32
      %24 = vector.broadcast %cst_16 : f32 to vector<1x128xf32>
      %25 = arith.maximumf %23, %24 : vector<1x128xf32>
      %c0_17 = arith.constant 0 : index
      %c0_18 = arith.constant 0 : index
      %26 = vector.load %arg4[%c0_17, %c0_18] : memref<2x128xf32, #tpu.memory_space<vmem>>, vector<1x128xf32>
      %c1 = arith.constant 1 : index
      %c0_19 = arith.constant 0 : index
      %27 = vector.load %arg4[%c1, %c0_19] : memref<2x128xf32, #tpu.memory_space<vmem>>, vector<1x128xf32>
      %cst_20 = arith.constant 9.99999974E-6 : f32
      %28 = vector.broadcast %cst_20 : f32 to vector<1x128xf32>
      %29 = arith.addf %25, %28 : vector<1x128xf32>
      %30 = math.rsqrt %29 : vector<1x128xf32>
      %31 = arith.mulf %30, %26 : vector<1x128xf32>
      %32 = arith.mulf %19, %31 : vector<1x128xf32>
      %33 = arith.subf %27, %32 : vector<1x128xf32>
      %34 = vector.broadcast %31 : vector<1x128xf32> to vector<8x128xf32>
      %35 = arith.mulf %12, %34 : vector<8x128xf32>
      %36 = vector.broadcast %33 : vector<1x128xf32> to vector<8x128xf32>
      %37 = arith.addf %35, %36 : vector<8x128xf32>
      %c0_21 = arith.constant 0 : index
      %c0_22 = arith.constant 0 : index
      %38 = vector.load %arg5[%c0_21, %c0_22] : memref<8x128xf32, #tpu.memory_space<vmem>>, vector<8x128xf32>
      tpu.vector_store %arg5[%c0_21, %c0_22], %37 {strides = array<i32>} : memref<8x128xf32, #tpu.memory_space<vmem>>, vector<8x128xf32>,
    } else {
    }
    return
  }
  func.func @transform_0(%arg0: i32, %arg1: i32) -> (i32, i32) {
    %c0_i32 = arith.constant 0 : i32
    %c0_i32_0 = arith.constant 0 : i32
    return %c0_i32, %arg1 : i32, i32
  }
  func.func @transform_1(%arg0: i32, %arg1: i32) -> (i32, i32) {
    %c0_i32 = arith.constant 0 : i32
    return %arg1, %arg0 : i32, i32
  }
  func.func @transform_2(%arg0: i32, %arg1: i32) -> (i32, i32) {
    %c0_i32 = arith.constant 0 : i32
    %c0_i32_0 = arith.constant 0 : i32
    return %c0_i32, %arg0 : i32, i32
  }
  func.func @transform_3(%arg0: i32, %arg1: i32) -> (i32, i32) {
    %c0_i32 = arith.constant 0 : i32
    %c0_i32_0 = arith.constant 0 : i32
    return %c0_i32, %arg0 : i32, i32
  }
}

</mosaic_0001>

<llo_original>
// kernel: tpu_custom_call.1
$region0: #{tpu_custom_call.1}
  #allocation0 [shape = 'u32[]', space=smem, size = 0x4, offset = 0x4, fixed_abs, tag = 'smem constant byte address 0x4 - core index']
  #allocation1 [shape = 'u32[72,128]{1,0:T(1,128)}', space=vmem, size = 0x9000, scoped, tag = 'internal scratch']
  #allocation2 [shape = 'f32[8,128]{1,0:T(8,128)}', space=vmem, size = 0x1000, scoped, tag = 'scratch operand']
  %s0 = inlined_call_operand.hbm [shape: bf16[8,32], index: 0, kind: input, shape index: {}]
  %s1 = inlined_call_operand.hbm [shape: bf16[32,256], index: 1, kind: input, shape index: {}]
  %s2 = inlined_call_operand.hbm [shape: f32[2,256], index: 2, kind: input, shape index: {}]
  %s3 = inlined_call_operand.hbm [shape: f32[8,256], index: 3, kind: output, shape index: {}]
  %s4 = sld [smem:[#allocation0]]
  $region65: #{tpu_custom_call.1} parent=0
    _
  %s6 = ssub.s32 1, %s4
  %s7 = scalar_select 0, %s6, %s4
  $region1: #{tpu_custom_call.1} parent=0
    #allocation3 [shape = 'u8[2048]{0}', space=vmem, size = 0x800, scoped, tag = 'input window, operand 0, single buffered']
    #allocation4 [shape = 's32[2]{0}', space=sflag, size = 0x8, scoped, tag = 'scoped memory for tpu_custom_call.1']
    #allocation5 [shape = 's32[2]{0}', space=sflag, size = 0x8, scoped, tag = 'scoped memory for tpu_custom_call.1']
    #allocation6 [shape = 'u8[16384]{0}', space=vmem, size = 0x4000, scoped, tag = 'input window, operand 1']
    #allocation7 [shape = 's32[2]{0}', space=sflag, size = 0x8, scoped, tag = 'scoped memory for tpu_custom_call.1']
    #allocation8 [shape = 'u8[2048]{0}', space=vmem, size = 0x800, scoped, tag = 'input window, operand 2']
    #allocation9 [shape = 'u8[8192]{0}', space=vmem, size = 0x2000, scoped, tag = 'output window, operand 0']
    %8 = vsyncpa [#allocation4], 0
    %9 = vsyncpa [#allocation7], 0
    %s10 = scalar_lea.sflag [#allocation7], 1
    %11 = vsyncpa %s10, 0
    %12 = vsyncpa [#allocation5], 0
    %s13 = scalar_lea.sflag [#allocation5], 1
    %14 = vsyncpa %s13, 0
    loop: start=0, step=1, limit=4
    $region2: #{tpu_custom_call.1} parent=1 // loop_pre_header
      _
    $region3: #{tpu_custom_call.1} parent=1 // loop_header
      %s16 = sphi 0, %s20
      %p17 = scmp.ge.s32.totalorder %s16, 4
      %s23 = sphi 0, %s35
      %s24 = sphi 0, %s31
      %s25 = sphi 0, %s23
      %s26 = sphi 0, %s24
      %s27 = sphi 0, %s25
      %s28 = sphi 0, %s26
      %s38 = sphi 0, %s40
      %s41 = sphi 0, %s38
      %s42 = sphi 0, %s41
      %s58 = sphi 0, %s42
      %s66 = sphi 0, %s68
      %s69 = sphi 0, %s66
      %s70 = sphi 0, %s69
      %s86 = sphi 0, %s70
      %s92 = sphi 0, %s94
      %s95 = sphi 0, %s92
      %s96 = sphi 0, %s95
      %s112 = sphi 0, %s96
      %s118 = sphi 0, %s120
      %s121 = sphi 0, %s118
      %s122 = sphi 0, %s121
      %s138 = sphi 0, %s122
    $region4: #{tpu_custom_call.1} parent=1 // loop_header_branch
      %19 = sbr.rel (%p17) target = $region8
    $region5: #{tpu_custom_call.1} parent=1 // loop_body
      %s21 = ssub.s32 %s16, 1
      %s22 = ssub.s32 %s16, 2
      %s29 = sadd.s32 1, %s24
      %p30 = scmp.ge.s32.totalorder %s29, 1
      %s31 = scalar_select %p30, 0, %s29
      %s32 = sadd.s32 1, %s23
      %s33 = scalar_select %p30, %s32, %s23
      %p34 = scmp.ge.s32.totalorder %s33, 2
      %s35 = scalar_select %p34, 0, %s33
      %s36 = ssub.s32 %s24, %s31
      %p37 = scmp.eq.s32.totalorder %s36, 0
      %s39 = sadd.s32 %s38, 1
      %s40 = scalar_select %p37, %s38, %s39
      %p43 = pneg %p37
      %p44 = scmp.eq.s32.totalorder %s16, 1
      %p45 = por %p43, %p44
      %p46 = scmp.ne.s32.totalorder %s38, %s41
      %p47 = scmp.eq.s32.totalorder %s16, 0
      %p48 = por %p46, %p47
      %p49 = scmp.ne.s32.totalorder %s38, %s41
      %p50 = scmp.eq.s32.totalorder %s21, 1
      %p51 = por %p49, %p50
      %p52 = scmp.ne.s32.totalorder %s41, %s42
      %p53 = scmp.eq.s32.totalorder %s21, 0
      %p54 = por %p52, %p53
      %p55 = scmp.ne.s32.totalorder %s41, %s42
      %p56 = scmp.eq.s32.totalorder %s22, 1
      %p57 = por %p55, %p56
      %p59 = scmp.ne.s32.totalorder %s42, %s58
      %p60 = scmp.eq.s32.totalorder %s22, 0
      %p61 = por %p59, %p60
      %s62 = ssub.s32 %s24, %s31
      %s63 = ssub.s32 %s23, %s35
      %s64 = sor.u32 %s62, %s63
      %p65 = scmp.eq.s32.totalorder %s64, 0
      %s67 = sadd.s32 %s66, 1
      %s68 = scalar_select %p65, %s66, %s67
      %p71 = pneg %p65
      %p72 = scmp.eq.s32.totalorder %s16, 1
      %p73 = por %p71, %p72
      %p74 = scmp.ne.s32.totalorder %s66, %s69
      %p75 = scmp.eq.s32.totalorder %s16, 0
      %p76 = por %p74, %p75
      %p77 = scmp.ne.s32.totalorder %s66, %s69
      %p78 = scmp.eq.s32.totalorder %s21, 1
      %p79 = por %p77, %p78
      %p80 = scmp.ne.s32.totalorder %s69, %s70
      %p81 = scmp.eq.s32.totalorder %s21, 0
      %p82 = por %p80, %p81
      %p83 = scmp.ne.s32.totalorder %s69, %s70
      %p84 = scmp.eq.s32.totalorder %s22, 1
      %p85 = por %p83, %p84
      %p87 = scmp.ne.s32.totalorder %s70, %s86
      %p88 = scmp.eq.s32.totalorder %s22, 0
      %p89 = por %p87, %p88
      %s90 = ssub.s32 %s23, %s35
      %p91 = scmp.eq.s32.totalorder %s90, 0
      %s93 = sadd.s32 %s92, 1
      %s94 = scalar_select %p91, %s92, %s93
      %p97 = pneg %p91
      %p98 = scmp.eq.s32.totalorder %s16, 1
      %p99 = por %p97, %p98
      %p100 = scmp.ne.s32.totalorder %s92, %s95
      %p101 = scmp.eq.s32.totalorder %s16, 0
      %p102 = por %p100, %p101
      %p103 = scmp.ne.s32.totalorder %s92, %s95
      %p104 = scmp.eq.s32.totalorder %s21, 1
      %p105 = por %p103, %p104
      %p106 = scmp.ne.s32.totalorder %s95, %s96
      %p107 = scmp.eq.s32.totalorder %s21, 0
      %p108 = por %p106, %p107
      %p109 = scmp.ne.s32.totalorder %s95, %s96
      %p110 = scmp.eq.s32.totalorder %s22, 1
      %p111 = por %p109, %p110
      %p113 = scmp.ne.s32.totalorder %s96, %s112
      %p114 = scmp.eq.s32.totalorder %s22, 0
      %p115 = por %p113, %p114
      %s116 = ssub.s32 %s23, %s35
      %p117 = scmp.eq.s32.totalorder %s116, 0
      %s119 = sadd.s32 %s118, 1
      %s120 = scalar_select %p117, %s118, %s119
      %p123 = pneg %p117
      %p124 = scmp.eq.s32.totalorder %s16, 1
      %p125 = por %p123, %p124
      %p126 = scmp.ne.s32.totalorder %s118, %s121
      %p127 = scmp.eq.s32.totalorder %s16, 0
      %p128 = por %p126, %p127
      %p129 = scmp.ne.s32.totalorder %s118, %s121
      %p130 = scmp.eq.s32.totalorder %s21, 1
      %p131 = por %p129, %p130
      %p132 = scmp.ne.s32.totalorder %s121, %s122
      %p133 = scmp.eq.s32.totalorder %s21, 0
      %p134 = por %p132, %p133
      %p135 = scmp.ne.s32.totalorder %s121, %s122
      %p136 = scmp.eq.s32.totalorder %s22, 1
      %p137 = por %p135, %p136
      %p139 = scmp.ne.s32.totalorder %s122, %s138
      %p140 = scmp.eq.s32.totalorder %s22, 0
      %p141 = por %p139, %p140
      %p142 = scmp.le.s32.totalorder 1, %s16
      %p143 = scmp.lt.s32.totalorder %s16, 3
      %p144 = pnand %p142, %p143
      %p145 = pneg %p144
      // Predicated region
      $region9: #{tpu_custom_call.1} parent=5 // pred_check
        _
      $region10: #{tpu_custom_call.1} parent=5 // pred_check_branch
        %147 = sbr.rel (%p144) target = $region12
      $region11: #{tpu_custom_call.1} parent=5 // pred_region
        %s148 = ssub.s32 %s16, 1
        // Predicated region
        $region13: #{tpu_custom_call.1} parent=11 // pred_check
          %p149 = pneg %p54
        $region14: #{tpu_custom_call.1} parent=11 // pred_check_branch
          %151 = sbr.rel (%p149) target = $region16
        $region15: #{tpu_custom_call.1} parent=11 // pred_region
          %153 = vsyncadd [#allocation4], 0
          %s154 = smul.addr %s26, 4
          %s155 = scalar_lea.hbm %s0, %s154
          %s157 = sshll.u32 %s155, 4
          %s158 = int_to_ptr.hbm [resolvable:$true] %s157
          %s159 = sshll.u32 [#allocation3], 4
          %s160 = int_to_ptr.vmem [resolvable:$true] %s159
          %162 = dma.hbm_to_vmem [thread:$0]  %s158, 64, %s160, [#allocation4]
        $region16: #{tpu_custom_call.1} parent=11 // pred_fallthru
          _
      $region12: #{tpu_custom_call.1} parent=5 // pred_fallthru
        _
      %p163 = scmp.lt.s32.totalorder %s16, 2
      // Predicated region
      $region17: #{tpu_custom_call.1} parent=5 // pred_check
        %p164 = pneg %p163
      $region18: #{tpu_custom_call.1} parent=5 // pred_check_branch
        %166 = sbr.rel (%p164) target = $region20
      $region19: #{tpu_custom_call.1} parent=5 // pred_region
        // Predicated region
        $region21: #{tpu_custom_call.1} parent=19 // pred_check
          %p167 = pneg %p76
        $region22: #{tpu_custom_call.1} parent=19 // pred_check_branch
          %169 = sbr.rel (%p167) target = $region24
        $region23: #{tpu_custom_call.1} parent=19 // pred_region
          %s170 = sand.u32 %s16, 1
          %s171 = scalar_lea.sflag [#allocation7], %s170
          %s172 = sand.u32 %s66, 1
          %s173 = smul.addr %s172, 16
          %s174 = scalar_lea.vmem [#allocation6], %s173
          %s175 = smul.u32 4, %s24
          %177 = vsyncadd %s171, 0
          %s178 = smul.addr %s175, 2
          %s179 = sadd.s32 %s23, %s178
          %s180 = smul.addr %s179, 4
          %s181 = scalar_lea.hbm %s1, %s180
          %s182 = sshll.u32 %s181, 4
          %s183 = int_to_ptr.hbm [resolvable:$true] %s182
          %s184 = sshll.u32 %s174, 4
          %s185 = int_to_ptr.vmem [resolvable:$true] %s184
          %190 = dma.hbm_to_vmem [thread:$0]  %s183, 256, %s185, %s171, 128, 64, 4
        $region24: #{tpu_custom_call.1} parent=19 // pred_fallthru
          _
        // Predicated region
        $region25: #{tpu_custom_call.1} parent=19 // pred_check
          %p191 = pneg %p102
        $region26: #{tpu_custom_call.1} parent=19 // pred_check_branch
          %193 = sbr.rel (%p191) target = $region28
        $region27: #{tpu_custom_call.1} parent=19 // pred_region
          %s194 = sand.u32 %s16, 1
          %s195 = scalar_lea.sflag [#allocation7], %s194
          %s196 = sand.u32 %s92, 1
          %s197 = smul.addr %s196, 2
          %s198 = scalar_lea.vmem [#allocation8], %s197
          %200 = vsyncadd %s195, 0
          %s201 = smul.addr %s23, 2
          %s202 = scalar_lea.hbm %s2, %s201
          %s204 = sshll.u32 %s202, 4
          %s205 = int_to_ptr.hbm [resolvable:$true] %s204
          %s206 = sshll.u32 %s198, 4
          %s207 = int_to_ptr.vmem [resolvable:$true] %s206
          %209 = dma.hbm_to_vmem [thread:$0]  %s205, 32, %s207, %s195
        $region28: #{tpu_custom_call.1} parent=19 // pred_fallthru
          _
      $region20: #{tpu_custom_call.1} parent=5 // pred_fallthru
        _
      %p210 = scmp.le.s32.totalorder 1, %s16
      %p211 = scmp.lt.s32.totalorder %s16, 3
      %p212 = pnand %p210, %p211
      %p213 = pneg %p212
      // Predicated region
      $region29: #{tpu_custom_call.1} parent=5 // pred_check
        _
      $region30: #{tpu_custom_call.1} parent=5 // pred_check_branch
        %215 = sbr.rel (%p212) target = $region32
      $region31: #{tpu_custom_call.1} parent=5 // pred_region
        %s216 = ssub.s32 %s16, 1
        // Predicated region
        $region33: #{tpu_custom_call.1} parent=31 // pred_check
          %p217 = pneg %p54
        $region34: #{tpu_custom_call.1} parent=31 // pred_check_branch
          %219 = sbr.rel (%p217) target = $region36
        $region35: #{tpu_custom_call.1} parent=31 // pred_region
          %221 = dma.done [#allocation4], 64
        $region36: #{tpu_custom_call.1} parent=31 // pred_fallthru
          _
        %s222 = sand.u32 %s21, 1
        %s223 = scalar_lea.sflag [#allocation7], %s222
        %s224 = sand.u32 %s69, 1
        %s225 = smul.addr %s224, 16
        %s226 = scalar_lea.vmem [#allocation6], %s225
        // Predicated region
        $region37: #{tpu_custom_call.1} parent=31 // pred_check
          %p227 = pneg %p82
        $region38: #{tpu_custom_call.1} parent=31 // pred_check_branch
          %229 = sbr.rel (%p227) target = $region40
        $region39: #{tpu_custom_call.1} parent=31 // pred_region
          %231 = dma.done %s223, 256
        $region40: #{tpu_custom_call.1} parent=31 // pred_fallthru
          _
        %s232 = sand.u32 %s21, 1
        %s233 = scalar_lea.sflag [#allocation7], %s232
        %s234 = sand.u32 %s95, 1
        %s235 = smul.addr %s234, 2
        %s236 = scalar_lea.vmem [#allocation8], %s235
        // Predicated region
        $region41: #{tpu_custom_call.1} parent=31 // pred_check
          %p237 = pneg %p108
        $region42: #{tpu_custom_call.1} parent=31 // pred_check_branch
          %239 = sbr.rel (%p237) target = $region44
        $region43: #{tpu_custom_call.1} parent=31 // pred_region
          %241 = dma.done %s233, 32
        $region44: #{tpu_custom_call.1} parent=31 // pred_fallthru
          _
        %p242 = pneg %p54
        %p243 = pneg %p51
        %s244 = sand.u32 %s21, 1
        %s245 = scalar_lea.sflag [#allocation7], %s244
        %s246 = sand.u32 %s69, 1
        %s247 = smul.addr %s246, 16
        %s248 = scalar_lea.vmem [#allocation6], %s247
        %p249 = pneg %p82
        %p250 = pneg %p79
        %s251 = sand.u32 %s21, 1
        %s252 = scalar_lea.sflag [#allocation7], %s251
        %s253 = sand.u32 %s95, 1
        %s254 = smul.addr %s253, 2
        %s255 = scalar_lea.vmem [#allocation8], %s254
        %p256 = pneg %p108
        %p257 = pneg %p105
        %p258 = pneg %p134
        %p259 = pneg %p131
        %s260 = sand.u32 %s121, 1
        %s261 = scalar_lea.sflag [#allocation5], %s260
        %s262 = sand.u32 %s121, 1
        %s263 = smul.addr %s262, 8
        %s264 = scalar_lea.vmem [#allocation9], %s263
        %s265 = smul.u32 4, %s26
        %p267 = scmp.eq.s32.totalorder %s26, 0
        // Predicated region
        $region45: #{tpu_custom_call.1} parent=31 // pred_check
          %p268 = pneg %p267
        $region46: #{tpu_custom_call.1} parent=31 // pred_check_branch
          %270 = sbr.rel (%p268) target = $region48
        $region47: #{tpu_custom_call.1} parent=31 // pred_region
          %271 = vst [vmem:[#allocation2] sm:$0xff] 0.0
        $region48: #{tpu_custom_call.1} parent=31 // pred_fallthru
          _
        %v272 = vld [vmem:[#allocation2] sm:$0xff]
        %v273 = vld [vmem:[#allocation3] sm:$0xf]
        %v274 = vld [vmem:[%s226] sm:$0xf]
        %v275 = vld [vmem:[%s226 + $0x4] sm:$0xf]
        %v276 = vld [vmem:[%s226 + $0x8] sm:$0xf]
        %v277 = vld [vmem:[%s226 + $0xc] sm:$0xf]
        %v282 = vunpack.c.l.b16 %v274
        %v283 = vunpack.c.l.b16 %v275
        %v284 = vunpack.c.l.b16 %v276
        %v285 = vunpack.c.l.b16 %v277
        %v286 = vpack.c.b16 %v283, %v282
        %v287 = vpack.c.b16 %v285, %v284
        %vm290 = vcmask 261120
        %v292 = vsel %vm290, %v273, 0
        %294 = vmatpush.bf16.msra.mxu0 0
        %295 = vmatpush.bf16.msra.mxu0 0
        %296 = vmatpush.bf16.msra.mxu0 0
        %297 = vmatpush.bf16.msra.mxu0 0
        %298 = vmatpush.bf16.msra.mxu0 0
        %299 = vmatpush.bf16.msra.mxu0 0
        %300 = vmatpush.bf16.msra.mxu0 %v287
        %301 = vmatpush.bf16.msra.mxu0 %v286
        %302 = vmatmul.bf16.gmra.mxu0 %v292
        %v303 = vpop.f32.mrf.mxu0
        %v304 = vadd.f32 0.0, %v303
        %v305 = vpop.f32.mrf.mxu0
        %306 = vdwg.mxu0
        %v307 = vadd.f32 %v272, %v304
        %308 = vst [vmem:[#allocation2] sm:$0xff] %v307
        // Predicated region
        $region49: #{tpu_custom_call.1} parent=31 // pred_check
          %p309 = pneg %p267
        $region50: #{tpu_custom_call.1} parent=31 // pred_check_branch
          %311 = sbr.rel (%p309) target = $region52
        $region51: #{tpu_custom_call.1} parent=31 // pred_region
          %v312 = vld [vmem:[#allocation2] sm:$0xff]
          %v313 = vrot.slane %v312, 4
          %v314 = vadd.f32 %v312, %v313
          %v315 = vrot.slane %v314, 2
          %v316 = vadd.f32 %v314, %v315
          %v317 = vrot.slane %v316, 1
          %v318 = vadd.f32 %v316, %v317
          %v319 = vmul.f32 %v312, %v312
          %v320 = vrot.slane %v319, 4
          %v321 = vadd.f32 %v319, %v320
          %v322 = vrot.slane %v321, 2
          %v323 = vadd.f32 %v321, %v322
          %v324 = vrot.slane %v323, 1
          %v325 = vadd.f32 %v323, %v324
          %v326 = vmul.f32 %v318, 0.125
          %v327 = vmul.f32 %v325, 0.125
          %v328 = vmul.f32 %v326, %v326
          %v329 = vsub.f32 %v327, %v328
          %v330 = vmax.f32 %v329, 0.0
          %v331 = vld [vmem:[%s236] sm:$0x1]
          %v332 = vld [vmem:[%s236 + $0x1] sm:$0x1]
          %v333 = vadd.f32 %v330, 1e-05
          %v334 = vrsqrt.pop %v333
          %v335 = vmul.f32 %v334, %v333
          %v336 = vmul.f32 %v335, %v334
          %v337 = vmul.f32 0.5, %v336
          %v338 = vsub.f32 1.5, %v337
          %v339 = vmul.f32 %v334, %v338
          %vm340 = vweird.f32 %v333
          %vm341 = vweird.f32 %v334
          %vm342 = vmor %vm340, %vm341
          %v343 = vsel %vm342, %v334, %v339
          %v344 = vmul.f32 %v343, %v331
          %v345 = vmul.f32 %v326, %v344
          %v346 = vsub.f32 %v332, %v345
          %v347 = vperm.slane %v344, 0
          %v348 = vmul.f32 %v312, %v347
          %v349 = vperm.slane %v346, 0
          %v350 = vadd.f32 %v348, %v349
          %351 = vst [vmem:[%s264] sm:$0xff] %v350
        $region52: #{tpu_custom_call.1} parent=31 // pred_fallthru
          _
        %s352 = sand.u32 %s121, 1
        %s353 = scalar_lea.sflag [#allocation5], %s352
        %s354 = sand.u32 %s121, 1
        %s355 = smul.addr %s354, 8
        %s356 = scalar_lea.vmem [#allocation9], %s355
        // Predicated region
        $region53: #{tpu_custom_call.1} parent=31 // pred_check
          %p357 = pneg %p131
        $region54: #{tpu_custom_call.1} parent=31 // pred_check_branch
          %359 = sbr.rel (%p357) target = $region56
        $region55: #{tpu_custom_call.1} parent=31 // pred_region
          %361 = vsyncadd %s353, 0
          %s362 = smul.addr %s25, 8
          %s363 = scalar_lea.hbm %s3, %s362
          %s365 = sshll.u32 %s356, 4
          %s366 = int_to_ptr.vmem [resolvable:$true] %s365
          %s367 = sshll.u32 %s363, 4
          %s368 = int_to_ptr.hbm [resolvable:$true] %s367
          %370 = dma.vmem_to_hbm [thread:$0]  %s366, 128, %s368, %s353
        $region56: #{tpu_custom_call.1} parent=31 // pred_fallthru
          _
      $region32: #{tpu_custom_call.1} parent=5 // pred_fallthru
        _
      %p371 = scmp.le.s32.totalorder 2, %s16
      // Predicated region
      $region57: #{tpu_custom_call.1} parent=5 // pred_check
        %p372 = pneg %p371
      $region58: #{tpu_custom_call.1} parent=5 // pred_check_branch
        %374 = sbr.rel (%p372) target = $region60
      $region59: #{tpu_custom_call.1} parent=5 // pred_region
        %s375 = ssub.s32 %s16, 2
        // Predicated region
        $region61: #{tpu_custom_call.1} parent=59 // pred_check
          %p376 = pneg %p137
        $region62: #{tpu_custom_call.1} parent=59 // pred_check_branch
          %378 = sbr.rel (%p376) target = $region64
        $region63: #{tpu_custom_call.1} parent=59 // pred_region
          %s379 = sand.u32 %s122, 1
          %s380 = scalar_lea.sflag [#allocation5], %s379
          %s381 = sand.u32 %s122, 1
          %s382 = smul.addr %s381, 8
          %s383 = scalar_lea.vmem [#allocation9], %s382
          %385 = dma.done %s380, 128
        $region64: #{tpu_custom_call.1} parent=59 // pred_fallthru
          _
      $region60: #{tpu_custom_call.1} parent=5 // pred_fallthru
        _
    $region6: #{tpu_custom_call.1} parent=1 // loop_footer
      %s20 = sadd.s32 1, %s16
    $region7: #{tpu_custom_call.1} parent=1 // loop_footer_branch
      %15 = sbr.rel target = $region3
    $region8: #{tpu_custom_call.1} parent=1 // loop_exit
      _
    %386 = vsyncpa [#allocation4], 1
    %s387 = scalar_lea.sflag [#allocation4], 1
    %388 = vsyncpa %s387, 1
    %389 = vsyncpa [#allocation7], 1
    %s390 = scalar_lea.sflag [#allocation7], 1
    %391 = vsyncpa %s390, 1
    %392 = vsyncpa [#allocation5], 1
    %s393 = scalar_lea.sflag [#allocation5], 1
    %394 = vsyncpa %s393, 1

</llo_original>
